<compile_context>
chip_gen: v7x
topology: tpu7x:2x2x1
jax: 0.10.0
libtpu: 0.0.40
codegen_flags: <defaults>
</compile_context>

<pallas_src>
import math
from functools import partial

import jax
import jax.numpy as jnp
from jax.experimental import pallas as pl
from jax.experimental.pallas import tpu as pltpu


_LANE = 128      # TPU lane width (last dim)
_SUBLANE = 8     # f32 sublane width (second-to-last dim)
_NEG_BIG = -1e9  # fc3 bias pad value -> exp() underflows to exactly 0


def _round_up(x, m):
    return ((x + m - 1) // m) * m


# ---------------------------------------------------------------------------
# One-time capability probe: can this jax/Mosaic lower pipeline_mode=Buffered(1)?
# (single-buffering for grid-constant weight blocks).  Pure capability check:
# the real kernel build below is unconditional.
# ---------------------------------------------------------------------------
def _probe_buffered_one():
    if not hasattr(pl, "Buffered"):
        return False
    try:
        w_spec = pl.BlockSpec((8, 128), lambda i: (0, 0),
                              pipeline_mode=pl.Buffered(1))
    except TypeError:
        return False

    def k(x_ref, w_ref, o_ref):
        o_ref[...] = x_ref[...] + w_ref[...]

    try:
        fn = pl.pallas_call(
            k,
            out_shape=jax.ShapeDtypeStruct((16, 128), jnp.float32),
            grid_spec=pltpu.PrefetchScalarGridSpec(
                num_scalar_prefetch=0,
                grid=(2,),
                in_specs=[pl.BlockSpec((8, 128), lambda i: (i, 0)), w_spec],
                out_specs=pl.BlockSpec((8, 128), lambda i: (i, 0)),
            ),
        )
        jax.jit(fn).lower(
            jax.ShapeDtypeStruct((16, 128), jnp.float32),
            jax.ShapeDtypeStruct((8, 128), jnp.float32),
        )
        return True
    except Exception:
        return False


_BUFFERED1_OK = _probe_buffered_one()


if _BUFFERED1_OK:
    def _const_spec(shape):
        # constant index_map across grid steps + single-buffer (halves weight VMEM)
        return pl.BlockSpec(shape, lambda i: (0, 0), pipeline_mode=pl.Buffered(1))
else:
    def _const_spec(shape):
        return pl.BlockSpec(shape, lambda i: (0, 0))


# ---------------------------------------------------------------------------
# Kernel
# ---------------------------------------------------------------------------
def actor_kernel(x_ref, w1_ref, w2_ref, w3_ref, b_ref, o_ref):
    """One batch tile: relu(x@W1+b1) -> relu(@W2+b2) -> softmax(@W3+b3)."""
    f32 = jnp.float32
    cdt = w1_ref.dtype                 # MXU input dtype (bf16)
    hp = w2_ref.shape[1]               # padded hidden width (multiple of 128)
    op = w3_ref.shape[1]               # padded output width (multiple of 128)

    x = x_ref[...].astype(cdt)         # (tb, d_in_pad8), natural feature width

    # biases kept in f32; b3 pad lanes hold -1e9 (softmax mask)
    b1 = b_ref[0:1, :hp]
    b2 = b_ref[1:2, :hp]
    b3 = b_ref[2:3, :op]

    h1 = jnp.dot(x, w1_ref[...], preferred_element_type=f32) + b1
    h1 = jnp.maximum(h1, 0.0)

    h2 = jnp.dot(h1.astype(cdt), w2_ref[...], preferred_element_type=f32) + b2
    h2 = jnp.maximum(h2, 0.0)

    logits = jnp.dot(h2.astype(cdt), w3_ref[...], preferred_element_type=f32) + b3

    # numerically-stable softmax over the feature (lane) axis, all in f32;
    # exact normalization (divide), pad lanes -> exp(~-1e9) == 0.
    m = jnp.max(logits, axis=-1, keepdims=True)
    e = jnp.exp(logits - m)
    s = jnp.sum(e, axis=-1, keepdims=True)
    o_ref[...] = (e / s).astype(o_ref.dtype)


# ---------------------------------------------------------------------------
# Params
# ---------------------------------------------------------------------------
def init_actor_params(key, input_dim, output_dim, hidden_dim):
    """f32 params mirroring nn.Linear's U(-1/sqrt(fan_in), 1/sqrt(fan_in)) init.

    Weights are stored (in_features, out_features), i.e. the transpose of
    PyTorch's .weight, so the forward pass is x @ W + b.
    """
    ks = jax.random.split(key, 6)

    def linear(kw, kb, fan_in, fan_out):
        bound = 1.0 / math.sqrt(fan_in)
        w = jax.random.uniform(kw, (fan_in, fan_out), jnp.float32, -bound, bound)
        b = jax.random.uniform(kb, (fan_out,), jnp.float32, -bound, bound)
        return w, b

    w1, b1 = linear(ks[0], ks[1], input_dim, hidden_dim)
    w2, b2 = linear(ks[2], ks[3], hidden_dim, hidden_dim)
    w3, b3 = linear(ks[4], ks[5], hidden_dim, output_dim)
    return {"w1": w1, "b1": b1, "w2": w2, "b2": b2, "w3": w3, "b3": b3}


def pack_actor_params(params, *, compute_dtype=jnp.bfloat16):
    """Pad params for the kernel.

    * w1 rows keep the natural input width (padded only to a multiple of 8
      sublanes) -> no 8x lane blow-up of x.
    * hidden / output widths are lane-padded to multiples of 128 so every
      matmul output and the final store are lane-dense.
    * Biases stay float32, stacked as [b1; b2; b3]; b3 pad lanes hold -1e9.
    """
    d_in, h = params["w1"].shape
    d_out = params["w3"].shape[1]
    dp8 = _round_up(d_in, _SUBLANE)    # sublane pad only
    hp = _round_up(h, _LANE)
    op = _round_up(d_out, _LANE)
    bp = max(hp, op)

    def pad2(w, r, c):
        return jnp.pad(w, ((0, r - w.shape[0]), (0, c - w.shape[1])))

    w1 = pad2(params["w1"], dp8, hp).astype(compute_dtype)
    w2 = pad2(params["w2"], hp, hp).astype(compute_dtype)
    w3 = pad2(params["w3"], hp, op).astype(compute_dtype)

    b1 = jnp.pad(params["b1"].reshape(-1), (0, bp - h))
    b2 = jnp.pad(params["b2"].reshape(-1), (0, bp - h))
    b3 = jnp.pad(params["b3"].reshape(-1), (0, bp - d_out),
                 constant_values=_NEG_BIG)
    b = jnp.stack([b1, b2, b3], axis=0).astype(jnp.float32)

    return {"w1": w1, "w2": w2, "w3": w3, "b": b, "dims": (d_in, h, d_out)}


# ---------------------------------------------------------------------------
# Forward
# ---------------------------------------------------------------------------
@partial(jax.jit, static_argnames=("dims", "batch_tile"))
def _actor_forward_impl(x, w1, w2, w3, b, *, dims, batch_tile):
    d_in, h, d_out = dims
    dp8, hp = w1.shape
    op = w3.shape[1]
    bp = b.shape[1]
    cdt = w1.dtype
    w_item = jnp.dtype(cdt).itemsize
    x_item = jnp.dtype(x.dtype).itemsize

    B = x.shape[0]
    assert x.shape[1] == d_in, (x.shape, d_in)

    # Batch tile: multiple of 8 sublanes.  Default targets >= 2 grid steps so
    # v7x's two TensorCores can split the (parallel) batch axis; the extra
    # grid step is ~0.35us on single-TC v5e/v6e (negligible vs. large tiles).
    if batch_tile is None:
        tb = _round_up(max(pl.cdiv(B, 2), _SUBLANE), _SUBLANE)
        tb = min(tb, 2048)
    else:
        tb = max(_SUBLANE, _round_up(int(batch_tile), _SUBLANE))

    # VMEM estimate: double-buffered x/out tiles, (single|double)-buffered
    # weights, live f32 intermediates.  Shrink tb to fit a conservative budget
    # and pass the resulting need as vmem_limit_bytes (v5e default is 16 MiB).
    nbuf_w = 1 if _BUFFERED1_OK else 2
    w_vmem = ((dp8 * hp + hp * hp + hp * op) * w_item + 3 * bp * 4) * nbuf_w

    def tile_bytes(t):
        return (2 * t * dp8 * x_item          # x tile (double-buffered)
                + 2 * t * op * 2              # bf16 out tile (double-buffered)
                + 6 * t * max(hp, op) * 4)    # f32 intermediates + headroom

    budget = 20 * 1024 * 1024
    while tb > _SUBLANE and w_vmem + tile_bytes(tb) > budget:
        tb = max(_SUBLANE, _round_up(tb // 2, _SUBLANE))

    bpad = _round_up(B, tb)                   # ragged batch -> zero-padded rows
    grid = (bpad // tb,)
    x_p = jnp.pad(x, ((0, bpad - B), (0, dp8 - d_in)))

    vmem_limit = int(min(32 * 1024 * 1024,
                         max(16 * 1024 * 1024,
                             w_vmem + tile_bytes(tb) + (4 << 20))))

    cost = pl.CostEstimate(
        flops=2 * bpad * (dp8 * hp + hp * hp + hp * op),
        transcendentals=bpad * op,            # exp
        bytes_accessed=(x_p.size * x_item
                        + (dp8 * hp + hp * hp + hp * op) * w_item
                        + 3 * bp * 4
                        + bpad * op * 2),
    )

    out_p = pl.pallas_call(
        actor_kernel,
        out_shape=jax.ShapeDtypeStruct((bpad, op), jnp.bfloat16),
        grid_spec=pltpu.PrefetchScalarGridSpec(
            num_scalar_prefetch=0,
            grid=grid,
            in_specs=[
                pl.BlockSpec((tb, dp8), lambda i: (i, 0)),   # x tile (natural width)
                _const_spec((dp8, hp)),                      # w1
                _const_spec((hp, hp)),                       # w2
                _const_spec((hp, op)),                       # w3
                _const_spec((3, bp)),                        # [b1; b2; b3] (f32)
            ],
            out_specs=pl.BlockSpec((tb, op), lambda i: (i, 0)),
        ),
        compiler_params=pltpu.CompilerParams(
            dimension_semantics=("parallel",),
            vmem_limit_bytes=vmem_limit),
        cost_estimate=cost,
    )(x_p, w1, w2, w3, b)

    # Slice away batch / lane padding and upcast; fused into the same XLA program.
    return out_p[:B, :d_out].astype(jnp.float32)


def actor_forward(x, packed, *, batch_tile=None):
    """x: (B, input_dim) -> (B, output_dim) softmax probabilities (float32)."""
    return _actor_forward_impl(x, packed["w1"], packed["w2"], packed["w3"],
                               packed["b"], dims=packed["dims"],
                               batch_tile=batch_tile)


def actor_ref(x, p):
    """Pure-JAX reference matching the PyTorch module."""
    h = jnp.maximum(x @ p["w1"] + p["b1"], 0.0)
    h = jnp.maximum(h @ p["w2"] + p["b2"], 0.0)
    return jax.nn.softmax(h @ p["w3"] + p["b3"], axis=1)


if __name__ == "__main__":
    key = jax.random.PRNGKey(0)
    k_x, k_p = jax.random.split(key)

    # small MADDPG-like sizes; default tiling gives grid=(2,) (128-row tiles)
    batch, input_dim, hidden_dim, output_dim = 256, 16, 32, 8

    x = jax.random.normal(k_x, (batch, input_dim), jnp.float32)
    params = init_actor_params(k_p, input_dim, output_dim, hidden_dim)
    packed = pack_actor_params(params, compute_dtype=jnp.bfloat16)

    out = actor_forward(x, packed)
    out = jax.block_until_ready(out)

    # reference: same bf16-rounded weights / input, f32 biases, f32 math
    rp = {
        "w1": params["w1"].astype(jnp.bfloat16).astype(jnp.float32),
        "w2": params["w2"].astype(jnp.bfloat16).astype(jnp.float32),
        "w3": params["w3"].astype(jnp.bfloat16).astype(jnp.float32),
        "b1": params["b1"], "b2": params["b2"], "b3": params["b3"],
    }
    ref = actor_ref(x.astype(jnp.bfloat16).astype(jnp.float32), rp)

    assert out.shape == (batch, output_dim)
    assert out.dtype == jnp.float32
    assert bool(jnp.all(jnp.isfinite(out)))
    max_err = float(jnp.max(jnp.abs(out - ref)))
    # bf16 MXU inputs + bf16 output rounding -> a few e-3 of softmax error
    assert jnp.allclose(out, ref, atol=2e-2, rtol=2e-2), max_err
    # rows of a softmax sum to 1 (bf16 output rounding -> small slack)
    assert jnp.allclose(jnp.sum(out, axis=1), 1.0, atol=5e-3)

    print("KERNEL_OK")
</pallas_src>

<mosaic_0001>
module attributes {stable_mosaic.version = 11 : i64} {
  func.func @actor_kernel(%arg0: i32, %arg1: memref<128x16xf32, #tpu.memory_space<vmem>>, %arg2: memref<16x128xbf16, #tpu.memory_space<vmem>>, %arg3: memref<128x128xbf16, #tpu.memory_space<vmem>>, %arg4: memref<128x128xbf16, #tpu.memory_space<vmem>>, %arg5: memref<3x128xf32, #tpu.memory_space<vmem>>, %arg6: memref<128x128xbf16, #tpu.memory_space<vmem>>) attributes {dimension_semantics = [#tpu.dimension_semantics<parallel>], iteration_bounds = array<i64: 2>, scalar_prefetch = 0 : i64, scratch_operands = 0 : i64, tpu.core_type = #tpu.core_type<tc>, window_params = [{transform_indices = @transform_0, window_bounds = array<i64: 128, 16>}, {pipeline_mode = #tpu.pipeline_mode<synchronous>, transform_indices = @transform_1, window_bounds = array<i64: 16, 128>}, {pipeline_mode = #tpu.pipeline_mode<synchronous>, transform_indices = @transform_2, window_bounds = array<i64: 128, 128>}, {pipeline_mode = #tpu.pipeline_mode<synchronous>, transform_indices = @transform_3, window_bounds = array<i64: 128, 128>}, {pipeline_mode = #tpu.pipeline_mode<synchronous>, transform_indices = @transform_4, window_bounds = array<i64: 3, 128>}, {transform_indices = @transform_5, window_bounds = array<i64: 128, 128>}]} {
    %c0 = arith.constant 0 : index
    %c0_0 = arith.constant 0 : index
    %0 = vector.load %arg1[%c0, %c0_0] : memref<128x16xf32, #tpu.memory_space<vmem>>, vector<128x16xf32>
    %1 = arith.truncf %0 : vector<128x16xf32> to vector<128x16xbf16>
    %c0_1 = arith.constant 0 : index
    %c0_2 = arith.constant 0 : index
    %2 = vector.load %arg5[%c0_1, %c0_2] : memref<3x128xf32, #tpu.memory_space<vmem>>, vector<1x128xf32>
    %c1 = arith.constant 1 : index
    %c0_3 = arith.constant 0 : index
    %3 = vector.load %arg5[%c1, %c0_3] : memref<3x128xf32, #tpu.memory_space<vmem>>, vector<1x128xf32>
    %c2 = arith.constant 2 : index
    %c0_4 = arith.constant 0 : index
    %4 = vector.load %arg5[%c2, %c0_4] : memref<3x128xf32, #tpu.memory_space<vmem>>, vector<1x128xf32>
    %c0_5 = arith.constant 0 : index
    %c0_6 = arith.constant 0 : index
    %5 = vector.load %arg2[%c0_5, %c0_6] : memref<16x128xbf16, #tpu.memory_space<vmem>>, vector<16x128xbf16>
    %cst = arith.constant dense<0.000000e+00> : vector<128x128xf32>
    %6 = tpu.matmul %1, %5, %cst {dimension_numbers = #tpu.dot_dimension_numbers<[1], [0], [0], [1], [0, 0, 1, 1], [], []>} : vector<128x16xbf16>, vector<16x128xbf16>, vector<128x128xf32> -> vector<128x128xf32>
    %7 = vector.broadcast %2 : vector<1x128xf32> to vector<128x128xf32>
    %8 = arith.addf %6, %7 : vector<128x128xf32>
    %cst_7 = arith.constant 0.000000e+00 : f32
    %9 = vector.broadcast %cst_7 : f32 to vector<128x128xf32>
    %10 = arith.maximumf %8, %9 : vector<128x128xf32>
    %11 = arith.truncf %10 : vector<128x128xf32> to vector<128x128xbf16>
    %c0_8 = arith.constant 0 : index
    %c0_9 = arith.constant 0 : index
    %12 = vector.load %arg3[%c0_8, %c0_9] : memref<128x128xbf16, #tpu.memory_space<vmem>>, vector<128x128xbf16>
    %cst_10 = arith.constant dense<0.000000e+00> : vector<128x128xf32>
    %13 = tpu.matmul %11, %12, %cst_10 {dimension_numbers = #tpu.dot_dimension_numbers<[1], [0], [0], [1], [0, 0, 1, 1], [], []>} : vector<128x128xbf16>, vector<128x128xbf16>, vector<128x128xf32> -> vector<128x128xf32>
    %14 = vector.broadcast %3 : vector<1x128xf32> to vector<128x128xf32>
    %15 = arith.addf %13, %14 : vector<128x128xf32>
    %cst_11 = arith.constant 0.000000e+00 : f32
    %16 = vector.broadcast %cst_11 : f32 to vector<128x128xf32>
    %17 = arith.maximumf %15, %16 : vector<128x128xf32>
    %18 = arith.truncf %17 : vector<128x128xf32> to vector<128x128xbf16>
    %c0_12 = arith.constant 0 : index
    %c0_13 = arith.constant 0 : index
    %19 = vector.load %arg4[%c0_12, %c0_13] : memref<128x128xbf16, #tpu.memory_space<vmem>>, vector<128x128xbf16>
    %cst_14 = arith.constant dense<0.000000e+00> : vector<128x128xf32>
    %20 = tpu.matmul %18, %19, %cst_14 {dimension_numbers = #tpu.dot_dimension_numbers<[1], [0], [0], [1], [0, 0, 1, 1], [], []>} : vector<128x128xbf16>, vector<128x128xbf16>, vector<128x128xf32> -> vector<128x128xf32>
    %21 = vector.broadcast %4 : vector<1x128xf32> to vector<128x128xf32>
    %22 = arith.addf %20, %21 : vector<128x128xf32>
    %cst_15 = arith.constant dense<0xFF800000> : vector<128xf32>
    %23 = vector.multi_reduction <maximumf>, %22, %cst_15 [1] : vector<128x128xf32> to vector<128xf32>
    %24 = vector.shape_cast %23 : vector<128xf32> to vector<128x1xf32>
    %25 = vector.broadcast %24 : vector<128x1xf32> to vector<128x128xf32>
    %26 = arith.subf %22, %25 : vector<128x128xf32>
    %27 = math.exp %26 : vector<128x128xf32>
    %cst_16 = arith.constant dense<0.000000e+00> : vector<128xf32>
    %28 = vector.multi_reduction <add>, %27, %cst_16 [1] : vector<128x128xf32> to vector<128xf32>
    %29 = vector.shape_cast %28 : vector<128xf32> to vector<128x1xf32>
    %30 = vector.broadcast %29 : vector<128x1xf32> to vector<128x128xf32>
    %31 = arith.divf %27, %30 : vector<128x128xf32>
    %32 = arith.truncf %31 : vector<128x128xf32> to vector<128x128xbf16>
    %c0_17 = arith.constant 0 : index
    %c0_18 = arith.constant 0 : index
    %33 = vector.load %arg6[%c0_17, %c0_18] : memref<128x128xbf16, #tpu.memory_space<vmem>>, vector<128x128xbf16>
    tpu.vector_store %arg6[%c0_17, %c0_18], %32 {strides = array<i32>} : memref<128x128xbf16, #tpu.memory_space<vmem>>, vector<128x128xbf16>,
    return
  }
  func.func @transform_0(%arg0: i32) -> (i32, i32) {
    %c0_i32 = arith.constant 0 : i32
    %c0_i32_0 = arith.constant 0 : i32
    return %arg0, %c0_i32 : i32, i32
  }
  func.func @transform_1(%arg0: i32) -> (i32, i32) {
    %c0_i32 = arith.constant 0 : i32
    %c0_i32_0 = arith.constant 0 : i32
    %c0_i32_1 = arith.constant 0 : i32
    return %c0_i32, %c0_i32_0 : i32, i32
  }
  func.func @transform_2(%arg0: i32) -> (i32, i32) {
    %c0_i32 = arith.constant 0 : i32
    %c0_i32_0 = arith.constant 0 : i32
    %c0_i32_1 = arith.constant 0 : i32
    return %c0_i32, %c0_i32_0 : i32, i32
  }
  func.func @transform_3(%arg0: i32) -> (i32, i32) {
    %c0_i32 = arith.constant 0 : i32
    %c0_i32_0 = arith.constant 0 : i32
    %c0_i32_1 = arith.constant 0 : i32
    return %c0_i32, %c0_i32_0 : i32, i32
  }
  func.func @transform_4(%arg0: i32) -> (i32, i32) {
    %c0_i32 = arith.constant 0 : i32
    %c0_i32_0 = arith.constant 0 : i32
    %c0_i32_1 = arith.constant 0 : i32
    return %c0_i32, %c0_i32_0 : i32, i32
  }
  func.func @transform_5(%arg0: i32) -> (i32, i32) {
    %c0_i32 = arith.constant 0 : i32
    %c0_i32_0 = arith.constant 0 : i32
    return %arg0, %c0_i32 : i32, i32
  }
}

</mosaic_0001>

<llo_original>
// kernel: _actor_forward_impl.1
$region0: #{_actor_forward_impl.1}
  #allocation0 [shape = 'u32[]', space=smem, size = 0x4, offset = 0x4, fixed_abs, tag = 'smem constant byte address 0x4 - core index']
  #allocation1 [shape = 'u32[144,128]{1,0:T(1,128)}', space=vmem, size = 0x12000, scoped, tag = 'internal scratch']
  %s0 = inlined_call_operand.vmem [shape: f32[256,16], index: 0, kind: input, shape index: {}]
  %s1 = inlined_call_operand.vmem [shape: bf16[16,128], index: 1, kind: input, shape index: {}]
  %s2 = inlined_call_operand.vmem [shape: bf16[128,128], index: 2, kind: input, shape index: {}]
  %s3 = inlined_call_operand.vmem [shape: bf16[128,128], index: 3, kind: input, shape index: {}]
  %s4 = inlined_call_operand.vmem [shape: f32[3,128], index: 4, kind: input, shape index: {}]
  %s5 = inlined_call_operand.vmem [shape: bf16[256,128], index: 5, kind: output, shape index: {}]
  %s6 = sld [smem:[#allocation0]]
  $region53: #{_actor_forward_impl.1} parent=0
    _
  %s8 = ssub.s32 1, %s6
  %s9 = scalar_select 0, %s8, %s6
  loop: start=0, step=1, limit=4
  $region2: #{_actor_forward_impl.1} parent=0 // loop_pre_header
    _
  $region3: #{_actor_forward_impl.1} parent=0 // loop_header
    %s11 = sphi 0, %s15
    %p12 = scmp.ge.s32.totalorder %s11, 4
    %s21 = sphi 0, %s23
    %s24 = sphi 0, %s21
    %s25 = sphi 0, %s24
    %s41 = sphi 0, %s25
    %s45 = sphi 0, %s45
    %s47 = sphi 0, %s45
    %s48 = sphi 0, %s47
    %s62 = sphi 0, %s48
    %s66 = sphi 0, %s66
    %s68 = sphi 0, %s66
    %s69 = sphi 0, %s68
    %s83 = sphi 0, %s69
    %s87 = sphi 0, %s87
    %s89 = sphi 0, %s87
    %s90 = sphi 0, %s89
    %s104 = sphi 0, %s90
    %s108 = sphi 0, %s108
    %s110 = sphi 0, %s108
    %s111 = sphi 0, %s110
    %s125 = sphi 0, %s111
    %s131 = sphi 0, %s133
    %s134 = sphi 0, %s131
    %s135 = sphi 0, %s134
    %s151 = sphi 0, %s135
  $region4: #{_actor_forward_impl.1} parent=0 // loop_header_branch
    %14 = sbr.rel (%p12) target = $region8
  $region5: #{_actor_forward_impl.1} parent=0 // loop_body
    %s16 = ssub.s32 %s11, 1
    %s17 = ssub.s32 %s11, 2
    %s18 = sadd.s32 %s11, 1
    %s19 = ssub.s32 %s11, %s18
    %p20 = scmp.eq.s32.totalorder %s19, 0
    %s22 = sadd.s32 %s21, 1
    %s23 = scalar_select %p20, %s21, %s22
    %p26 = pneg %p20
    %p27 = scmp.eq.s32.totalorder %s11, 1
    %p28 = por %p26, %p27
    %p29 = scmp.ne.s32.totalorder %s21, %s24
    %p30 = scmp.eq.s32.totalorder %s11, 0
    %p31 = por %p29, %p30
    %p32 = scmp.ne.s32.totalorder %s21, %s24
    %p33 = scmp.eq.s32.totalorder %s16, 1
    %p34 = por %p32, %p33
    %p35 = scmp.ne.s32.totalorder %s24, %s25
    %p36 = scmp.eq.s32.totalorder %s16, 0
    %p37 = por %p35, %p36
    %p38 = scmp.ne.s32.totalorder %s24, %s25
    %p39 = scmp.eq.s32.totalorder %s17, 1
    %p40 = por %p38, %p39
    %p42 = scmp.ne.s32.totalorder %s25, %s41
    %p43 = scmp.eq.s32.totalorder %s17, 0
    %p44 = por %p42, %p43
    %s46 = sadd.s32 %s45, 1
    %p49 = scmp.eq.s32.totalorder %s11, 1
    %p50 = scmp.ne.s32.totalorder %s45, %s47
    %p51 = scmp.eq.s32.totalorder %s11, 0
    %p52 = por %p50, %p51
    %p53 = scmp.ne.s32.totalorder %s45, %s47
    %p54 = scmp.eq.s32.totalorder %s16, 1
    %p55 = por %p53, %p54
    %p56 = scmp.ne.s32.totalorder %s47, %s48
    %p57 = scmp.eq.s32.totalorder %s16, 0
    %p58 = por %p56, %p57
    %p59 = scmp.ne.s32.totalorder %s47, %s48
    %p60 = scmp.eq.s32.totalorder %s17, 1
    %p61 = por %p59, %p60
    %p63 = scmp.ne.s32.totalorder %s48, %s62
    %p64 = scmp.eq.s32.totalorder %s17, 0
    %p65 = por %p63, %p64
    %s67 = sadd.s32 %s66, 1
    %p70 = scmp.eq.s32.totalorder %s11, 1
    %p71 = scmp.ne.s32.totalorder %s66, %s68
    %p72 = scmp.eq.s32.totalorder %s11, 0
    %p73 = por %p71, %p72
    %p74 = scmp.ne.s32.totalorder %s66, %s68
    %p75 = scmp.eq.s32.totalorder %s16, 1
    %p76 = por %p74, %p75
    %p77 = scmp.ne.s32.totalorder %s68, %s69
    %p78 = scmp.eq.s32.totalorder %s16, 0
    %p79 = por %p77, %p78
    %p80 = scmp.ne.s32.totalorder %s68, %s69
    %p81 = scmp.eq.s32.totalorder %s17, 1
    %p82 = por %p80, %p81
    %p84 = scmp.ne.s32.totalorder %s69, %s83
    %p85 = scmp.eq.s32.totalorder %s17, 0
    %p86 = por %p84, %p85
    %s88 = sadd.s32 %s87, 1
    %p91 = scmp.eq.s32.totalorder %s11, 1
    %p92 = scmp.ne.s32.totalorder %s87, %s89
    %p93 = scmp.eq.s32.totalorder %s11, 0
    %p94 = por %p92, %p93
    %p95 = scmp.ne.s32.totalorder %s87, %s89
    %p96 = scmp.eq.s32.totalorder %s16, 1
    %p97 = por %p95, %p96
    %p98 = scmp.ne.s32.totalorder %s89, %s90
    %p99 = scmp.eq.s32.totalorder %s16, 0
    %p100 = por %p98, %p99
    %p101 = scmp.ne.s32.totalorder %s89, %s90
    %p102 = scmp.eq.s32.totalorder %s17, 1
    %p103 = por %p101, %p102
    %p105 = scmp.ne.s32.totalorder %s90, %s104
    %p106 = scmp.eq.s32.totalorder %s17, 0
    %p107 = por %p105, %p106
    %s109 = sadd.s32 %s108, 1
    %p112 = scmp.eq.s32.totalorder %s11, 1
    %p113 = scmp.ne.s32.totalorder %s108, %s110
    %p114 = scmp.eq.s32.totalorder %s11, 0
    %p115 = por %p113, %p114
    %p116 = scmp.ne.s32.totalorder %s108, %s110
    %p117 = scmp.eq.s32.totalorder %s16, 1
    %p118 = por %p116, %p117
    %p119 = scmp.ne.s32.totalorder %s110, %s111
    %p120 = scmp.eq.s32.totalorder %s16, 0
    %p121 = por %p119, %p120
    %p122 = scmp.ne.s32.totalorder %s110, %s111
    %p123 = scmp.eq.s32.totalorder %s17, 1
    %p124 = por %p122, %p123
    %p126 = scmp.ne.s32.totalorder %s111, %s125
    %p127 = scmp.eq.s32.totalorder %s17, 0
    %p128 = por %p126, %p127
    %s129 = ssub.s32 %s11, %s18
    %p130 = scmp.eq.s32.totalorder %s129, 0
    %s132 = sadd.s32 %s131, 1
    %s133 = scalar_select %p130, %s131, %s132
    %p136 = pneg %p130
    %p137 = scmp.eq.s32.totalorder %s11, 1
    %p138 = por %p136, %p137
    %p139 = scmp.ne.s32.totalorder %s131, %s134
    %p140 = scmp.eq.s32.totalorder %s11, 0
    %p141 = por %p139, %p140
    %p142 = scmp.ne.s32.totalorder %s131, %s134
    %p143 = scmp.eq.s32.totalorder %s16, 1
    %p144 = por %p142, %p143
    %p145 = scmp.ne.s32.totalorder %s134, %s135
    %p146 = scmp.eq.s32.totalorder %s16, 0
    %p147 = por %p145, %p146
    %p148 = scmp.ne.s32.totalorder %s134, %s135
    %p149 = scmp.eq.s32.totalorder %s17, 1
    %p150 = por %p148, %p149
    %p152 = scmp.ne.s32.totalorder %s135, %s151
    %p153 = scmp.eq.s32.totalorder %s17, 0
    %p154 = por %p152, %p153
    %p155 = scmp.le.s32.totalorder 1, %s11
    %p156 = scmp.lt.s32.totalorder %s11, 3
    %p157 = pnand %p155, %p156
    %p158 = pneg %p157
    // Predicated region
    $region9: #{_actor_forward_impl.1} parent=5 // pred_check
      _
    $region10: #{_actor_forward_impl.1} parent=5 // pred_check_branch
      %160 = sbr.rel (%p157) target = $region12
    $region11: #{_actor_forward_impl.1} parent=5 // pred_region
      %s161 = ssub.s32 %s11, 1
      // Predicated region
      $region13: #{_actor_forward_impl.1} parent=11 // pred_check
        %p162 = pneg %p58
      $region14: #{_actor_forward_impl.1} parent=11 // pred_check_branch
        %164 = sbr.rel (%p162) target = $region16
      $region15: #{_actor_forward_impl.1} parent=11 // pred_region
        _
      $region16: #{_actor_forward_impl.1} parent=11 // pred_fallthru
        _
      // Predicated region
      $region17: #{_actor_forward_impl.1} parent=11 // pred_check
        %p165 = pneg %p79
      $region18: #{_actor_forward_impl.1} parent=11 // pred_check_branch
        %167 = sbr.rel (%p165) target = $region20
      $region19: #{_actor_forward_impl.1} parent=11 // pred_region
        _
      $region20: #{_actor_forward_impl.1} parent=11 // pred_fallthru
        _
      // Predicated region
      $region21: #{_actor_forward_impl.1} parent=11 // pred_check
        %p168 = pneg %p100
      $region22: #{_actor_forward_impl.1} parent=11 // pred_check_branch
        %170 = sbr.rel (%p168) target = $region24
      $region23: #{_actor_forward_impl.1} parent=11 // pred_region
        _
      $region24: #{_actor_forward_impl.1} parent=11 // pred_fallthru
        _
      // Predicated region
      $region25: #{_actor_forward_impl.1} parent=11 // pred_check
        %p171 = pneg %p121
      $region26: #{_actor_forward_impl.1} parent=11 // pred_check_branch
        %173 = sbr.rel (%p171) target = $region28
      $region27: #{_actor_forward_impl.1} parent=11 // pred_region
        _
      $region28: #{_actor_forward_impl.1} parent=11 // pred_fallthru
        _
    $region12: #{_actor_forward_impl.1} parent=5 // pred_fallthru
      _
    %p174 = scmp.lt.s32.totalorder %s11, 2
    // Predicated region
    $region29: #{_actor_forward_impl.1} parent=5 // pred_check
      %p175 = pneg %p174
    $region30: #{_actor_forward_impl.1} parent=5 // pred_check_branch
      %177 = sbr.rel (%p175) target = $region32
    $region31: #{_actor_forward_impl.1} parent=5 // pred_region
      // Predicated region
      $region33: #{_actor_forward_impl.1} parent=31 // pred_check
        %p178 = pneg %p31
      $region34: #{_actor_forward_impl.1} parent=31 // pred_check_branch
        %180 = sbr.rel (%p178) target = $region36
      $region35: #{_actor_forward_impl.1} parent=31 // pred_region
        %s181 = smul.u32 16, %s11
        %p182 = scmp.lt.s32.totalorder %s181, 31
        %s183 = scalar_select %p182, %s181, 31
        %s184 = smul.addr %s183, 8
        %s185 = scalar_lea.vmem %s0, %s184
        %s186 = smul.u32 16, %s11
      $region36: #{_actor_forward_impl.1} parent=31 // pred_fallthru
        _
    $region32: #{_actor_forward_impl.1} parent=5 // pred_fallthru
      _
    %p187 = scmp.le.s32.totalorder 1, %s11
    %p188 = scmp.lt.s32.totalorder %s11, 3
    %p189 = pnand %p187, %p188
    %p190 = pneg %p189
    // Predicated region
    $region37: #{_actor_forward_impl.1} parent=5 // pred_check
      _
    $region38: #{_actor_forward_impl.1} parent=5 // pred_check_branch
      %192 = sbr.rel (%p189) target = $region40
    $region39: #{_actor_forward_impl.1} parent=5 // pred_region
      %s193 = ssub.s32 %s11, 1
      %s194 = smul.u32 16, %s16
      %p195 = scmp.lt.s32.totalorder %s194, 31
      %s196 = scalar_select %p195, %s194, 31
      %s197 = smul.addr %s196, 8
      %s198 = scalar_lea.vmem %s0, %s197
      %p199 = pneg %p37
      %p200 = pneg %p34
      %p201 = pneg %p58
      %p202 = pneg %p55
      %p203 = pneg %p79
      %p204 = pneg %p76
      %p205 = pneg %p100
      %p206 = pneg %p97
      %p207 = pneg %p121
      %p208 = pneg %p118
      %p209 = pneg %p147
      %p210 = pneg %p144
      %s211 = smul.u32 16, %s16
      %p212 = scmp.lt.s32.totalorder %s211, 31
      %s213 = scalar_select %p212, %s211, 31
      %s214 = smul.addr %s213, 4
      %s215 = scalar_lea.vmem %s5, %s214
      %s216 = smul.u32 16, %s16
      %p217 = scmp.lt.s32.totalorder %s216, 31
      %s218 = scalar_select %p217, %s216, 31
      %s219 = smul.addr %s218, 8
      %s220 = scalar_lea.vmem %s0, %s219
      %s221 = smul.u32 16, %s16
      %s222 = smul.u32 16, %s16
      %p223 = scmp.lt.s32.totalorder %s222, 31
      %s224 = scalar_select %p223, %s222, 31
      %s225 = smul.addr %s224, 4
      %s226 = scalar_lea.vmem %s5, %s225
      %s227 = smul.u32 16, %s16
      %v229 = vld [vmem:[%s220] sm:$0xff]
      %v230 = vld [vmem:[%s220 + $0x8] sm:$0xff]
      %v231 = vld [vmem:[%s220 + $0x10] sm:$0xff]
      %v232 = vld [vmem:[%s220 + $0x18] sm:$0xff]
      %v233 = vld [vmem:[%s220 + $0x20] sm:$0xff]
      %v234 = vld [vmem:[%s220 + $0x28] sm:$0xff]
      %v235 = vld [vmem:[%s220 + $0x30] sm:$0xff]
      %v236 = vld [vmem:[%s220 + $0x38] sm:$0xff]
      %v237 = vld [vmem:[%s220 + $0x40] sm:$0xff]
      %v238 = vld [vmem:[%s220 + $0x48] sm:$0xff]
      %v239 = vld [vmem:[%s220 + $0x50] sm:$0xff]
      %v240 = vld [vmem:[%s220 + $0x58] sm:$0xff]
      %v241 = vld [vmem:[%s220 + $0x60] sm:$0xff]
      %v242 = vld [vmem:[%s220 + $0x68] sm:$0xff]
      %v243 = vld [vmem:[%s220 + $0x70] sm:$0xff]
      %v244 = vld [vmem:[%s220 + $0x78] sm:$0xff]
      %v245 = vpack.c.bf16 %v230, %v229
      %v246 = vpack.c.bf16 %v232, %v231
      %v247 = vpack.c.bf16 %v234, %v233
      %v248 = vpack.c.bf16 %v236, %v235
      %v249 = vpack.c.bf16 %v238, %v237
      %v250 = vpack.c.bf16 %v240, %v239
      %v251 = vpack.c.bf16 %v242, %v241
      %v252 = vpack.c.bf16 %v244, %v243
      %v253 = vld [vmem:[%s4] sm:$0x1]
      %v254 = vld [vmem:[%s4 + $0x1] sm:$0x1]
      %v255 = vld [vmem:[%s4 + $0x2] sm:$0x1]
      %v256 = vld [vmem:[%s1] sm:$0xf]
      %v257 = vld [vmem:[%s1 + $0x4] sm:$0xf]
      %v258 = vlaneseq
      %v259 = vshrl.u32 %v258, 7
      %v260 = vsub.s32 0, %v259
      %v261 = vrot.slane %v253, %v260
      %v264 = vunpack.c.l.b16 %v256
      %v265 = vunpack.c.l.b16 %v257
      %v266 = vpack.c.b16 %v265, %v264
      %vm268 = vcmask 130048
      %v270 = vsel %vm268, %v245, 0
      %v273 = vsel %vm268, %v246, 0
      %v276 = vsel %vm268, %v247, 0
      %v279 = vsel %vm268, %v248, 0
      %v282 = vsel %vm268, %v249, 0
      %v285 = vsel %vm268, %v250, 0
      %v288 = vsel %vm268, %v251, 0
      %v291 = vsel %vm268, %v252, 0
      %293 = vmatprep.subr.bf16.mxu0 0
      %294 = vmatpush1.bf16.msra.mxu0 %v266
      %295 = vmatprep.subr.bf16.mxu0 0
      %296 = vmatpush1.bf16.msra.mxu0 0
      %297 = vmatprep.subr.bf16.mxu0 0
      %298 = vmatpush1.bf16.msra.mxu0 0
      %299 = vmatprep.subr.bf16.mxu0 0
      %300 = vmatpush1.bf16.msra.mxu0 0
      %301 = vmatprep.subr.bf16.mxu0 0
      %302 = vmatpush1.bf16.msra.mxu0 0
      %303 = vmatprep.subr.bf16.mxu0 0
      %304 = vmatpush1.bf16.msra.mxu0 0
      %305 = vmatprep.subr.bf16.mxu0 0
      %306 = vmatpush1.bf16.msra.mxu0 0
      %307 = vmatprep.subr.bf16.mxu0 0
      %308 = vmatpush1.bf16.msra.mxu0 0
      %309 = vmatprep.subr.bf16.mxu0 0
      %310 = vmatpush1.bf16.msra.mxu0 0
      %311 = vmatprep.subr.bf16.mxu0 0
      %312 = vmatpush1.bf16.msra.mxu0 0
      %313 = vmatprep.subr.bf16.mxu0 0
      %314 = vmatpush1.bf16.msra.mxu0 0
      %315 = vmatprep.subr.bf16.mxu0 0
      %316 = vmatpush1.bf16.msra.mxu0 0
      %317 = vmatprep.subr.bf16.mxu0 0
      %318 = vmatpush1.bf16.msra.mxu0 0
      %319 = vmatprep.subr.bf16.mxu0 0
      %320 = vmatpush1.bf16.msra.mxu0 0
      %321 = vmatprep.subr.bf16.mxu0 0
      %322 = vmatpush1.bf16.msra.mxu0 0
      %323 = vmatprep.subr.bf16.mxu0 0
      %324 = vmatpush1.bf16.msra.mxu0 0
      %325 = vmatprep.mubr.bf16.mxu0 0
      %326 = vmatmul.mubr.bf16.gmra.mrb[0].mxu0 %v270
      %v327 = vpop.f32.mrb[0].mxu0
      %v328 = vadd.f32 %v261, %v327
      %v329 = vpop.f32.mrb[0].mxu0
      %v330 = vpop.f32.mrb[0].mxu0
      %v331 = vadd.f32 %v261, %v330
      %v332 = vpop.f32.mrb[0].mxu0
      %333 = vmatprep.mubr.bf16.mxu0 0
      %334 = vmatmul.mubr.bf16.gmra.mrb[0].mxu0 %v273
      %v335 = vpop.f32.mrb[0].mxu0
      %v336 = vadd.f32 %v261, %v335
      %v337 = vpop.f32.mrb[0].mxu0
      %v338 = vpop.f32.mrb[0].mxu0
      %v339 = vadd.f32 %v261, %v338
      %v340 = vpop.f32.mrb[0].mxu0
      %341 = vmatprep.mubr.bf16.mxu0 0
      %342 = vmatmul.mubr.bf16.gmra.mrb[0].mxu0 %v276
      %v343 = vpop.f32.mrb[0].mxu0
      %v344 = vadd.f32 %v261, %v343
      %v345 = vpop.f32.mrb[0].mxu0
      %v346 = vpop.f32.mrb[0].mxu0
      %v347 = vadd.f32 %v261, %v346
      %v348 = vpop.f32.mrb[0].mxu0
      %349 = vmatprep.mubr.bf16.mxu0 0
      %350 = vmatmul.mubr.bf16.gmra.mrb[0].mxu0 %v279
      %v351 = vpop.f32.mrb[0].mxu0
      %v352 = vadd.f32 %v261, %v351
      %v353 = vpop.f32.mrb[0].mxu0
      %v354 = vpop.f32.mrb[0].mxu0
      %v355 = vadd.f32 %v261, %v354
      %v356 = vpop.f32.mrb[0].mxu0
      %357 = vmatprep.mubr.bf16.mxu0 0
      %358 = vmatmul.mubr.bf16.gmra.mrb[0].mxu0 %v282
      %v359 = vpop.f32.mrb[0].mxu0
      %v360 = vadd.f32 %v261, %v359
      %v361 = vpop.f32.mrb[0].mxu0
      %v362 = vpop.f32.mrb[0].mxu0
      %v363 = vadd.f32 %v261, %v362
      %v364 = vpop.f32.mrb[0].mxu0
      %365 = vmatprep.mubr.bf16.mxu0 0
      %366 = vmatmul.mubr.bf16.gmra.mrb[0].mxu0 %v285
      %v367 = vpop.f32.mrb[0].mxu0
      %v368 = vadd.f32 %v261, %v367
      %v369 = vpop.f32.mrb[0].mxu0
      %v370 = vpop.f32.mrb[0].mxu0
      %v371 = vadd.f32 %v261, %v370
      %v372 = vpop.f32.mrb[0].mxu0
      %373 = vmatprep.mubr.bf16.mxu0 0
      %374 = vmatmul.mubr.bf16.gmra.mrb[0].mxu0 %v288
      %v375 = vpop.f32.mrb[0].mxu0
      %v376 = vadd.f32 %v261, %v375
      %v377 = vpop.f32.mrb[0].mxu0
      %v378 = vpop.f32.mrb[0].mxu0
      %v379 = vadd.f32 %v261, %v378
      %v380 = vpop.f32.mrb[0].mxu0
      %381 = vmatprep.mubr.bf16.mxu0 0
      %382 = vmatmul.mubr.bf16.gmra.mrb[0].mxu0 %v291
      %v383 = vpop.f32.mrb[0].mxu0
      %v384 = vadd.f32 %v261, %v383
      %v385 = vpop.f32.mrb[0].mxu0
      %v386 = vpop.f32.mrb[0].mxu0
      %v387 = vadd.f32 %v261, %v386
      %v388 = vpop.f32.mrb[0].mxu0
      %389 = vdwg.mxu0
      %v390 = vmax.f32 %v328, 0.0
      %v391 = vmax.f32 %v331, 0.0
      %v392 = vmax.f32 %v336, 0.0
      %v393 = vmax.f32 %v339, 0.0
      %v394 = vmax.f32 %v344, 0.0
      %v395 = vmax.f32 %v347, 0.0
      %v396 = vmax.f32 %v352, 0.0
      %v397 = vmax.f32 %v355, 0.0
      %v398 = vmax.f32 %v360, 0.0
      %v399 = vmax.f32 %v363, 0.0
      %v400 = vmax.f32 %v368, 0.0
      %v401 = vmax.f32 %v371, 0.0
      %v402 = vmax.f32 %v376, 0.0
      %v403 = vmax.f32 %v379, 0.0
      %v404 = vmax.f32 %v384, 0.0
      %v405 = vmax.f32 %v387, 0.0
      %v406 = vpack.c.bf16 %v391, %v390
      %v407 = vpack.c.bf16 %v393, %v392
      %v408 = vpack.c.bf16 %v395, %v394
      %v409 = vpack.c.bf16 %v397, %v396
      %v410 = vpack.c.bf16 %v399, %v398
      %v411 = vpack.c.bf16 %v401, %v400
      %v412 = vpack.c.bf16 %v403, %v402
      %v413 = vpack.c.bf16 %v405, %v404
      %v414 = vld [vmem:[%s2] sm:$0xf]
      %v415 = vld [vmem:[%s2 + $0x4] sm:$0xf]
      %v416 = vld [vmem:[%s2 + $0x8] sm:$0xf]
      %v417 = vld [vmem:[%s2 + $0xc] sm:$0xf]
      %v418 = vld [vmem:[%s2 + $0x10] sm:$0xf]
      %v419 = vld [vmem:[%s2 + $0x14] sm:$0xf]
      %v420 = vld [vmem:[%s2 + $0x18] sm:$0xf]
      %v421 = vld [vmem:[%s2 + $0x1c] sm:$0xf]
      %v422 = vld [vmem:[%s2 + $0x20] sm:$0xf]
      %v423 = vld [vmem:[%s2 + $0x24] sm:$0xf]
      %v424 = vld [vmem:[%s2 + $0x28] sm:$0xf]
      %v425 = vld [vmem:[%s2 + $0x2c] sm:$0xf]
      %v426 = vld [vmem:[%s2 + $0x30] sm:$0xf]
      %v427 = vld [vmem:[%s2 + $0x34] sm:$0xf]
      %v428 = vld [vmem:[%s2 + $0x38] sm:$0xf]
      %v429 = vld [vmem:[%s2 + $0x3c] sm:$0xf]
      %v430 = vlaneseq
      %v431 = vshrl.u32 %v430, 7
      %v432 = vsub.s32 0, %v431
      %v433 = vrot.slane %v254, %v432
      %v450 = vunpack.c.l.b16 %v414
      %v451 = vunpack.c.l.b16 %v415
      %v452 = vunpack.c.l.b16 %v416
      %v453 = vunpack.c.l.b16 %v417
      %v454 = vunpack.c.l.b16 %v418
      %v455 = vunpack.c.l.b16 %v419
      %v456 = vunpack.c.l.b16 %v420
      %v457 = vunpack.c.l.b16 %v421
      %v458 = vunpack.c.l.b16 %v422
      %v459 = vunpack.c.l.b16 %v423
      %v460 = vunpack.c.l.b16 %v424
      %v461 = vunpack.c.l.b16 %v425
      %v462 = vunpack.c.l.b16 %v426
      %v463 = vunpack.c.l.b16 %v427
      %v464 = vunpack.c.l.b16 %v428
      %v465 = vunpack.c.l.b16 %v429
      %v466 = vpack.c.b16 %v451, %v450
      %v467 = vpack.c.b16 %v453, %v452
      %v468 = vpack.c.b16 %v455, %v454
      %v469 = vpack.c.b16 %v457, %v456
      %v470 = vpack.c.b16 %v459, %v458
      %v471 = vpack.c.b16 %v461, %v460
      %v472 = vpack.c.b16 %v463, %v462
      %v473 = vpack.c.b16 %v465, %v464
      %482 = vmatprep.subr.bf16.mxu0 0
      %483 = vmatpush1.bf16.msra.mxu0 %v466
      %484 = vmatprep.subr.bf16.mxu0 0
      %485 = vmatpush1.bf16.msra.mxu0 %v467
      %486 = vmatprep.subr.bf16.mxu0 0
      %487 = vmatpush1.bf16.msra.mxu0 %v468
      %488 = vmatprep.subr.bf16.mxu0 0
      %489 = vmatpush1.bf16.msra.mxu0 %v469
      %490 = vmatprep.subr.bf16.mxu0 0
      %491 = vmatpush1.bf16.msra.mxu0 %v470
      %492 = vmatprep.subr.bf16.mxu0 0
      %493 = vmatpush1.bf16.msra.mxu0 %v471
      %494 = vmatprep.subr.bf16.mxu0 0
      %495 = vmatpush1.bf16.msra.mxu0 %v472
      %496 = vmatprep.subr.bf16.mxu0 0
      %497 = vmatpush1.bf16.msra.mxu0 %v473
      %498 = vmatprep.subr.bf16.mxu0 0
      %499 = vmatpush1.bf16.msra.mxu0 0
      %500 = vmatprep.subr.bf16.mxu0 0
      %501 = vmatpush1.bf16.msra.mxu0 0
      %502 = vmatprep.subr.bf16.mxu0 0
      %503 = vmatpush1.bf16.msra.mxu0 0
      %504 = vmatprep.subr.bf16.mxu0 0
      %505 = vmatpush1.bf16.msra.mxu0 0
      %506 = vmatprep.subr.bf16.mxu0 0
      %507 = vmatpush1.bf16.msra.mxu0 0
      %508 = vmatprep.subr.bf16.mxu0 0
      %509 = vmatpush1.bf16.msra.mxu0 0
      %510 = vmatprep.subr.bf16.mxu0 0
      %511 = vmatpush1.bf16.msra.mxu0 0
      %512 = vmatprep.subr.bf16.mxu0 0
      %513 = vmatpush1.bf16.msra.mxu0 0
      %514 = vmatprep.mubr.bf16.mxu0 0
      %515 = vmatmul.mubr.bf16.gmra.mrb[0].mxu0 %v406
      %v516 = vpop.f32.mrb[0].mxu0
      %v517 = vadd.f32 %v433, %v516
      %v518 = vpop.f32.mrb[0].mxu0
      %v519 = vpop.f32.mrb[0].mxu0
      %v520 = vadd.f32 %v433, %v519
      %v521 = vpop.f32.mrb[0].mxu0
      %522 = vmatprep.mubr.bf16.mxu0 0
      %523 = vmatmul.mubr.bf16.gmra.mrb[0].mxu0 %v407
      %v524 = vpop.f32.mrb[0].mxu0
      %v525 = vadd.f32 %v433, %v524
      %v526 = vpop.f32.mrb[0].mxu0
      %v527 = vpop.f32.mrb[0].mxu0
      %v528 = vadd.f32 %v433, %v527
      %v529 = vpop.f32.mrb[0].mxu0
      %530 = vmatprep.mubr.bf16.mxu0 0
      %531 = vmatmul.mubr.bf16.gmra.mrb[0].mxu0 %v408
      %v532 = vpop.f32.mrb[0].mxu0
      %v533 = vadd.f32 %v433, %v532
      %v534 = vpop.f32.mrb[0].mxu0
      %v535 = vpop.f32.mrb[0].mxu0
      %v536 = vadd.f32 %v433, %v535
      %v537 = vpop.f32.mrb[0].mxu0
      %538 = vmatprep.mubr.bf16.mxu0 0
      %539 = vmatmul.mubr.bf16.gmra.mrb[0].mxu0 %v409
      %v540 = vpop.f32.mrb[0].mxu0
      %v541 = vadd.f32 %v433, %v540
      %v542 = vpop.f32.mrb[0].mxu0
      %v543 = vpop.f32.mrb[0].mxu0
      %v544 = vadd.f32 %v433, %v543
      %v545 = vpop.f32.mrb[0].mxu0
      %546 = vmatprep.mubr.bf16.mxu0 0
      %547 = vmatmul.mubr.bf16.gmra.mrb[0].mxu0 %v410
      %v548 = vpop.f32.mrb[0].mxu0
      %v549 = vadd.f32 %v433, %v548
      %v550 = vpop.f32.mrb[0].mxu0
      %v551 = vpop.f32.mrb[0].mxu0
      %v552 = vadd.f32 %v433, %v551
      %v553 = vpop.f32.mrb[0].mxu0
      %554 = vmatprep.mubr.bf16.mxu0 0
      %555 = vmatmul.mubr.bf16.gmra.mrb[0].mxu0 %v411
      %v556 = vpop.f32.mrb[0].mxu0
      %v557 = vadd.f32 %v433, %v556
      %v558 = vpop.f32.mrb[0].mxu0
      %v559 = vpop.f32.mrb[0].mxu0
      %v560 = vadd.f32 %v433, %v559
      %v561 = vpop.f32.mrb[0].mxu0
      %562 = vmatprep.mubr.bf16.mxu0 0
      %563 = vmatmul.mubr.bf16.gmra.mrb[0].mxu0 %v412
      %v564 = vpop.f32.mrb[0].mxu0
      %v565 = vadd.f32 %v433, %v564
      %v566 = vpop.f32.mrb[0].mxu0
      %v567 = vpop.f32.mrb[0].mxu0
      %v568 = vadd.f32 %v433, %v567
      %v569 = vpop.f32.mrb[0].mxu0
      %570 = vmatprep.mubr.bf16.mxu0 0
      %571 = vmatmul.mubr.bf16.gmra.mrb[0].mxu0 %v413
      %v572 = vpop.f32.mrb[0].mxu0
      %v573 = vadd.f32 %v433, %v572
      %v574 = vpop.f32.mrb[0].mxu0
      %v575 = vpop.f32.mrb[0].mxu0
      %v576 = vadd.f32 %v433, %v575
      %v577 = vpop.f32.mrb[0].mxu0
      %578 = vdwg.mxu0
      %v579 = vmax.f32 %v517, 0.0
      %v580 = vmax.f32 %v520, 0.0
      %v581 = vmax.f32 %v525, 0.0
      %v582 = vmax.f32 %v528, 0.0
      %v583 = vmax.f32 %v533, 0.0
      %v584 = vmax.f32 %v536, 0.0
      %v585 = vmax.f32 %v541, 0.0
      %v586 = vmax.f32 %v544, 0.0
      %v587 = vmax.f32 %v549, 0.0
      %v588 = vmax.f32 %v552, 0.0
      %v589 = vmax.f32 %v557, 0.0
      %v590 = vmax.f32 %v560, 0.0
      %v591 = vmax.f32 %v565, 0.0
      %v592 = vmax.f32 %v568, 0.0
      %v593 = vmax.f32 %v573, 0.0
      %v594 = vmax.f32 %v576, 0.0
      %v595 = vpack.c.bf16 %v580, %v579
      %v596 = vpack.c.bf16 %v582, %v581
      %v597 = vpack.c.bf16 %v584, %v583
      %v598 = vpack.c.bf16 %v586, %v585
      %v599 = vpack.c.bf16 %v588, %v587
      %v600 = vpack.c.bf16 %v590, %v589
      %v601 = vpack.c.bf16 %v592, %v591
      %v602 = vpack.c.bf16 %v594, %v593
      %v603 = vld [vmem:[%s3] sm:$0xf]
      %v604 = vld [vmem:[%s3 + $0x4] sm:$0xf]
      %v605 = vld [vmem:[%s3 + $0x8] sm:$0xf]
      %v606 = vld [vmem:[%s3 + $0xc] sm:$0xf]
      %v607 = vld [vmem:[%s3 + $0x10] sm:$0xf]
      %v608 = vld [vmem:[%s3 + $0x14] sm:$0xf]
      %v609 = vld [vmem:[%s3 + $0x18] sm:$0xf]
      %v610 = vld [vmem:[%s3 + $0x1c] sm:$0xf]
      %v611 = vld [vmem:[%s3 + $0x20] sm:$0xf]
      %v612 = vld [vmem:[%s3 + $0x24] sm:$0xf]
      %v613 = vld [vmem:[%s3 + $0x28] sm:$0xf]
      %v614 = vld [vmem:[%s3 + $0x2c] sm:$0xf]
      %v615 = vld [vmem:[%s3 + $0x30] sm:$0xf]
      %v616 = vld [vmem:[%s3 + $0x34] sm:$0xf]
      %v617 = vld [vmem:[%s3 + $0x38] sm:$0xf]
      %v618 = vld [vmem:[%s3 + $0x3c] sm:$0xf]
      %v619 = vlaneseq
      %v620 = vshrl.u32 %v619, 7
      %v621 = vsub.s32 0, %v620
      %v622 = vrot.slane %v255, %v621
      %v639 = vunpack.c.l.b16 %v603
      %v640 = vunpack.c.l.b16 %v604
      %v641 = vunpack.c.l.b16 %v605
      %v642 = vunpack.c.l.b16 %v606
      %v643 = vunpack.c.l.b16 %v607
      %v644 = vunpack.c.l.b16 %v608
      %v645 = vunpack.c.l.b16 %v609
      %v646 = vunpack.c.l.b16 %v610
      %v647 = vunpack.c.l.b16 %v611
      %v648 = vunpack.c.l.b16 %v612
      %v649 = vunpack.c.l.b16 %v613
      %v650 = vunpack.c.l.b16 %v614
      %v651 = vunpack.c.l.b16 %v615
      %v652 = vunpack.c.l.b16 %v616
      %v653 = vunpack.c.l.b16 %v617
      %v654 = vunpack.c.l.b16 %v618
      %v655 = vpack.c.b16 %v640, %v639
      %v656 = vpack.c.b16 %v642, %v641
      %v657 = vpack.c.b16 %v644, %v643
      %v658 = vpack.c.b16 %v646, %v645
      %v659 = vpack.c.b16 %v648, %v647
      %v660 = vpack.c.b16 %v650, %v649
      %v661 = vpack.c.b16 %v652, %v651
      %v662 = vpack.c.b16 %v654, %v653
      %671 = vmatprep.subr.bf16.mxu0 0
      %672 = vmatpush1.bf16.msra.mxu0 %v655
      %673 = vmatprep.subr.bf16.mxu0 0
      %674 = vmatpush1.bf16.msra.mxu0 %v656
      %675 = vmatprep.subr.bf16.mxu0 0
      %676 = vmatpush1.bf16.msra.mxu0 %v657
      %677 = vmatprep.subr.bf16.mxu0 0
      %678 = vmatpush1.bf16.msra.mxu0 %v658
      %679 = vmatprep.subr.bf16.mxu0 0
      %680 = vmatpush1.bf16.msra.mxu0 %v659
      %681 = vmatprep.subr.bf16.mxu0 0
      %682 = vmatpush1.bf16.msra.mxu0 %v660
      %683 = vmatprep.subr.bf16.mxu0 0
      %684 = vmatpush1.bf16.msra.mxu0 %v661
      %685 = vmatprep.subr.bf16.mxu0 0
      %686 = vmatpush1.bf16.msra.mxu0 %v662
      %687 = vmatprep.subr.bf16.mxu0 0
      %688 = vmatpush1.bf16.msra.mxu0 0
      %689 = vmatprep.subr.bf16.mxu0 0
      %690 = vmatpush1.bf16.msra.mxu0 0
      %691 = vmatprep.subr.bf16.mxu0 0
      %692 = vmatpush1.bf16.msra.mxu0 0
      %693 = vmatprep.subr.bf16.mxu0 0
      %694 = vmatpush1.bf16.msra.mxu0 0
      %695 = vmatprep.subr.bf16.mxu0 0
      %696 = vmatpush1.bf16.msra.mxu0 0
      %697 = vmatprep.subr.bf16.mxu0 0
      %698 = vmatpush1.bf16.msra.mxu0 0
      %699 = vmatprep.subr.bf16.mxu0 0
      %700 = vmatpush1.bf16.msra.mxu0 0
      %701 = vmatprep.subr.bf16.mxu0 0
      %702 = vmatpush1.bf16.msra.mxu0 0
      %703 = vmatprep.mubr.bf16.mxu0 0
      %704 = vmatmul.mubr.bf16.gmra.mrb[0].mxu0 %v595
      %v705 = vpop.f32.mrb[0].mxu0
      %v706 = vadd.f32 %v622, %v705
      %v707 = vpop.f32.mrb[0].mxu0
      %v708 = vpop.f32.mrb[0].mxu0
      %v709 = vadd.f32 %v622, %v708
      %v710 = vpop.f32.mrb[0].mxu0
      %711 = vmatprep.mubr.bf16.mxu0 0
      %712 = vmatmul.mubr.bf16.gmra.mrb[0].mxu0 %v596
      %v713 = vpop.f32.mrb[0].mxu0
      %v714 = vadd.f32 %v622, %v713
      %v715 = vpop.f32.mrb[0].mxu0
      %v716 = vpop.f32.mrb[0].mxu0
      %v717 = vadd.f32 %v622, %v716
      %v718 = vpop.f32.mrb[0].mxu0
      %719 = vmatprep.mubr.bf16.mxu0 0
      %720 = vmatmul.mubr.bf16.gmra.mrb[0].mxu0 %v597
      %v721 = vpop.f32.mrb[0].mxu0
      %v722 = vadd.f32 %v622, %v721
      %v723 = vpop.f32.mrb[0].mxu0
      %v724 = vpop.f32.mrb[0].mxu0
      %v725 = vadd.f32 %v622, %v724
      %v726 = vpop.f32.mrb[0].mxu0
      %727 = vmatprep.mubr.bf16.mxu0 0
      %728 = vmatmul.mubr.bf16.gmra.mrb[0].mxu0 %v598
      %v729 = vpop.f32.mrb[0].mxu0
      %v730 = vadd.f32 %v622, %v729
      %v731 = vpop.f32.mrb[0].mxu0
      %v732 = vpop.f32.mrb[0].mxu0
      %v733 = vadd.f32 %v622, %v732
      %v734 = vpop.f32.mrb[0].mxu0
      %735 = vmatprep.mubr.bf16.mxu0 0
      %736 = vmatmul.mubr.bf16.gmra.mrb[0].mxu0 %v599
      %v737 = vpop.f32.mrb[0].mxu0
      %v738 = vadd.f32 %v622, %v737
      %v739 = vpop.f32.mrb[0].mxu0
      %v740 = vpop.f32.mrb[0].mxu0
      %v741 = vadd.f32 %v622, %v740
      %v742 = vpop.f32.mrb[0].mxu0
      %743 = vmatprep.mubr.bf16.mxu0 0
      %744 = vmatmul.mubr.bf16.gmra.mrb[0].mxu0 %v600
      %v745 = vpop.f32.mrb[0].mxu0
      %v746 = vadd.f32 %v622, %v745
      %v747 = vpop.f32.mrb[0].mxu0
      %v748 = vpop.f32.mrb[0].mxu0
      %v749 = vadd.f32 %v622, %v748
      %v750 = vpop.f32.mrb[0].mxu0
      %751 = vmatprep.mubr.bf16.mxu0 0
      %752 = vmatmul.mubr.bf16.gmra.mrb[0].mxu0 %v601
      %v753 = vpop.f32.mrb[0].mxu0
      %v754 = vadd.f32 %v622, %v753
      %v755 = vpop.f32.mrb[0].mxu0
      %v756 = vpop.f32.mrb[0].mxu0
      %v757 = vadd.f32 %v622, %v756
      %v758 = vpop.f32.mrb[0].mxu0
      %759 = vmatprep.mubr.bf16.mxu0 0
      %760 = vmatmul.mubr.bf16.gmra.mrb[0].mxu0 %v602
      %v761 = vpop.f32.mrb[0].mxu0
      %v762 = vadd.f32 %v622, %v761
      %v763 = vpop.f32.mrb[0].mxu0
      %v764 = vpop.f32.mrb[0].mxu0
      %v765 = vadd.f32 %v622, %v764
      %v766 = vpop.f32.mrb[0].mxu0
      %767 = vdwg.mxu0
      %768 = vmax.xlane.f32.xlu0 %v706
      %v769 = vpop.xlane.xlu0 %768
      %770 = vmax.xlane.f32.xlu0 %v709
      %v771 = vpop.xlane.xlu0 %770
      %772 = vmax.xlane.f32.xlu0 %v714
      %v773 = vpop.xlane.xlu0 %772
      %774 = vmax.xlane.f32.xlu0 %v717
      %v775 = vpop.xlane.xlu0 %774
      %776 = vmax.xlane.f32.xlu0 %v722
      %v777 = vpop.xlane.xlu0 %776
      %778 = vmax.xlane.f32.xlu0 %v725
      %v779 = vpop.xlane.xlu0 %778
      %780 = vmax.xlane.f32.xlu0 %v730
      %v781 = vpop.xlane.xlu0 %780
      %782 = vmax.xlane.f32.xlu0 %v733
      %v783 = vpop.xlane.xlu0 %782
      %784 = vmax.xlane.f32.xlu0 %v738
      %v785 = vpop.xlane.xlu0 %784
      %786 = vmax.xlane.f32.xlu0 %v741
      %v787 = vpop.xlane.xlu0 %786
      %788 = vmax.xlane.f32.xlu0 %v746
      %v789 = vpop.xlane.xlu0 %788
      %790 = vmax.xlane.f32.xlu0 %v749
      %v791 = vpop.xlane.xlu0 %790
      %792 = vmax.xlane.f32.xlu0 %v754
      %v793 = vpop.xlane.xlu0 %792
      %794 = vmax.xlane.f32.xlu0 %v757
      %v795 = vpop.xlane.xlu0 %794
      %796 = vmax.xlane.f32.xlu0 %v762
      %v797 = vpop.xlane.xlu0 %796
      %798 = vmax.xlane.f32.xlu0 %v765
      %v799 = vpop.xlane.xlu0 %798
      %v800 = vsub.f32 %v706, %v769
      %v801 = vsub.f32 %v709, %v771
      %v802 = vsub.f32 %v714, %v773
      %v803 = vsub.f32 %v717, %v775
      %v804 = vsub.f32 %v722, %v777
      %v805 = vsub.f32 %v725, %v779
      %v806 = vsub.f32 %v730, %v781
      %v807 = vsub.f32 %v733, %v783
      %v808 = vsub.f32 %v738, %v785
      %v809 = vsub.f32 %v741, %v787
      %v810 = vsub.f32 %v746, %v789
      %v811 = vsub.f32 %v749, %v791
      %v812 = vsub.f32 %v754, %v793
      %v813 = vsub.f32 %v757, %v795
      %v814 = vsub.f32 %v762, %v797
      %v815 = vsub.f32 %v765, %v799
      %v816 = vmul.f32 %v800, 1.442695
      %v817 = vpow.pop %v816
      %v818 = vmul.f32 %v801, 1.442695
      %v819 = vpow.pop %v818
      %v820 = vmul.f32 %v802, 1.442695
      %v821 = vpow.pop %v820
      %v822 = vmul.f32 %v803, 1.442695
      %v823 = vpow.pop %v822
      %v824 = vmul.f32 %v804, 1.442695
      %v825 = vpow.pop %v824
      %v826 = vmul.f32 %v805, 1.442695
      %v827 = vpow.pop %v826
      %v828 = vmul.f32 %v806, 1.442695
      %v829 = vpow.pop %v828
      %v830 = vmul.f32 %v807, 1.442695
      %v831 = vpow.pop %v830
      %v832 = vmul.f32 %v808, 1.442695
      %v833 = vpow.pop %v832
      %v834 = vmul.f32 %v809, 1.442695
      %v835 = vpow.pop %v834
      %v836 = vmul.f32 %v810, 1.442695
      %v837 = vpow.pop %v836
      %v838 = vmul.f32 %v811, 1.442695
      %v839 = vpow.pop %v838
      %v840 = vmul.f32 %v812, 1.442695
      %v841 = vpow.pop %v840
      %v842 = vmul.f32 %v813, 1.442695
      %v843 = vpow.pop %v842
      %v844 = vmul.f32 %v814, 1.442695
      %v845 = vpow.pop %v844
      %v846 = vmul.f32 %v815, 1.442695
      %v847 = vpow.pop %v846
      %848 = vadd.xlane.f32.xlu0 %v817
      %v849 = vpop.xlane.xlu0 %848
      %850 = vadd.xlane.f32.xlu0 %v819
      %v851 = vpop.xlane.xlu0 %850
      %852 = vadd.xlane.f32.xlu0 %v821
      %v853 = vpop.xlane.xlu0 %852
      %854 = vadd.xlane.f32.xlu0 %v823
      %v855 = vpop.xlane.xlu0 %854
      %856 = vadd.xlane.f32.xlu0 %v825
      %v857 = vpop.xlane.xlu0 %856
      %858 = vadd.xlane.f32.xlu0 %v827
      %v859 = vpop.xlane.xlu0 %858
      %860 = vadd.xlane.f32.xlu0 %v829
      %v861 = vpop.xlane.xlu0 %860
      %862 = vadd.xlane.f32.xlu0 %v831
      %v863 = vpop.xlane.xlu0 %862
      %864 = vadd.xlane.f32.xlu0 %v833
      %v865 = vpop.xlane.xlu0 %864
      %866 = vadd.xlane.f32.xlu0 %v835
      %v867 = vpop.xlane.xlu0 %866
      %868 = vadd.xlane.f32.xlu0 %v837
      %v869 = vpop.xlane.xlu0 %868
      %870 = vadd.xlane.f32.xlu0 %v839
      %v871 = vpop.xlane.xlu0 %870
      %872 = vadd.xlane.f32.xlu0 %v841
      %v873 = vpop.xlane.xlu0 %872
      %874 = vadd.xlane.f32.xlu0 %v843
      %v875 = vpop.xlane.xlu0 %874
      %876 = vadd.xlane.f32.xlu0 %v845
      %v877 = vpop.xlane.xlu0 %876
      %878 = vadd.xlane.f32.xlu0 %v847
      %v879 = vpop.xlane.xlu0 %878
      %v880 = vrcp.pop %v849
      %v881 = vmul.f32 %v817, %v880
      %v882 = vrcp.pop %v851
      %v883 = vmul.f32 %v819, %v882
      %v884 = vrcp.pop %v853
      %v885 = vmul.f32 %v821, %v884
      %v886 = vrcp.pop %v855
      %v887 = vmul.f32 %v823, %v886
      %v888 = vrcp.pop %v857
      %v889 = vmul.f32 %v825, %v888
      %v890 = vrcp.pop %v859
      %v891 = vmul.f32 %v827, %v890
      %v892 = vrcp.pop %v861
      %v893 = vmul.f32 %v829, %v892
      %v894 = vrcp.pop %v863
      %v895 = vmul.f32 %v831, %v894
      %v896 = vrcp.pop %v865
      %v897 = vmul.f32 %v833, %v896
      %v898 = vrcp.pop %v867
      %v899 = vmul.f32 %v835, %v898
      %v900 = vrcp.pop %v869
      %v901 = vmul.f32 %v837, %v900
      %v902 = vrcp.pop %v871
      %v903 = vmul.f32 %v839, %v902
      %v904 = vrcp.pop %v873
      %v905 = vmul.f32 %v841, %v904
      %v906 = vrcp.pop %v875
      %v907 = vmul.f32 %v843, %v906
      %v908 = vrcp.pop %v877
      %v909 = vmul.f32 %v845, %v908
      %v910 = vrcp.pop %v879
      %v911 = vmul.f32 %v847, %v910
      %v912 = vpack.c.bf16 %v883, %v881
      %v913 = vpack.c.bf16 %v887, %v885
      %v914 = vpack.c.bf16 %v891, %v889
      %v915 = vpack.c.bf16 %v895, %v893
      %v916 = vpack.c.bf16 %v899, %v897
      %v917 = vpack.c.bf16 %v903, %v901
      %v918 = vpack.c.bf16 %v907, %v905
      %v919 = vpack.c.bf16 %v911, %v909
      %v928 = vunpack.c.l.b16 %v912
      %v929 = vunpack.c.h.b16 %v912
      %v930 = vunpack.c.l.b16 %v913
      %v931 = vunpack.c.h.b16 %v913
      %v932 = vunpack.c.l.b16 %v914
      %v933 = vunpack.c.h.b16 %v914
      %v934 = vunpack.c.l.b16 %v915
      %v935 = vunpack.c.h.b16 %v915
      %v936 = vunpack.c.l.b16 %v916
      %v937 = vunpack.c.h.b16 %v916
      %v938 = vunpack.c.l.b16 %v917
      %v939 = vunpack.c.h.b16 %v917
      %v940 = vunpack.c.l.b16 %v918
      %v941 = vunpack.c.h.b16 %v918
      %v942 = vunpack.c.l.b16 %v919
      %v943 = vunpack.c.h.b16 %v919
      %v944 = vpack.c.b16 %v928, %v928
      %v945 = vpack.c.b16 %v929, %v929
      %v946 = vpack.c.b16 %v930, %v930
      %v947 = vpack.c.b16 %v931, %v931
      %v948 = vpack.c.b16 %v932, %v932
      %v949 = vpack.c.b16 %v933, %v933
      %v950 = vpack.c.b16 %v934, %v934
      %v951 = vpack.c.b16 %v935, %v935
      %v952 = vpack.c.b16 %v936, %v936
      %v953 = vpack.c.b16 %v937, %v937
      %v954 = vpack.c.b16 %v938, %v938
      %v955 = vpack.c.b16 %v939, %v939
      %v956 = vpack.c.b16 %v940, %v940
      %v957 = vpack.c.b16 %v941, %v941
      %v958 = vpack.c.b16 %v942, %v942
      %v959 = vpack.c.b16 %v943, %v943
      %976 = vst [vmem:[%s226] sm:$0xf] %v944
      %977 = vst [vmem:[%s226 + $0x4] sm:$0xf] %v945
      %978 = vst [vmem:[%s226 + $0x8] sm:$0xf] %v946
      %979 = vst [vmem:[%s226 + $0xc] sm:$0xf] %v947
      %980 = vst [vmem:[%s226 + $0x10] sm:$0xf] %v948
      %981 = vst [vmem:[%s226 + $0x14] sm:$0xf] %v949
      %982 = vst [vmem:[%s226 + $0x18] sm:$0xf] %v950
      %983 = vst [vmem:[%s226 + $0x1c] sm:$0xf] %v951
      %984 = vst [vmem:[%s226 + $0x20] sm:$0xf] %v952
      %985 = vst [vmem:[%s226 + $0x24] sm:$0xf] %v953
      %986 = vst [vmem:[%s226 + $0x28] sm:$0xf] %v954
      %987 = vst [vmem:[%s226 + $0x2c] sm:$0xf] %v955
      %988 = vst [vmem:[%s226 + $0x30] sm:$0xf] %v956
      %989 = vst [vmem:[%s226 + $0x34] sm:$0xf] %v957
      %990 = vst [vmem:[%s226 + $0x38] sm:$0xf] %v958
      %991 = vst [vmem:[%s226 + $0x3c] sm:$0xf] %v959
      %s992 = smul.u32 16, %s16
      %p993 = scmp.lt.s32.totalorder %s992, 31
      %s994 = scalar_select %p993, %s992, 31
      %s995 = smul.addr %s994, 4
      %s996 = scalar_lea.vmem %s5, %s995
      // Predicated region
      $region41: #{_actor_forward_impl.1} parent=39 // pred_check
        %p997 = pneg %p144
      $region42: #{_actor_forward_impl.1} parent=39 // pred_check_branch
        %999 = sbr.rel (%p997) target = $region44
      $region43: #{_actor_forward_impl.1} parent=39 // pred_region
        %s1000 = smul.u32 16, %s16
      $region44: #{_actor_forward_impl.1} parent=39 // pred_fallthru
        _
    $region40: #{_actor_forward_impl.1} parent=5 // pred_fallthru
      _
    %p1001 = scmp.le.s32.totalorder 2, %s11
    // Predicated region
    $region45: #{_actor_forward_impl.1} parent=5 // pred_check
      %p1002 = pneg %p1001
    $region46: #{_actor_forward_impl.1} parent=5 // pred_check_branch
      %1004 = sbr.rel (%p1002) target = $region48
    $region47: #{_actor_forward_impl.1} parent=5 // pred_region
      %s1005 = ssub.s32 %s11, 2
      // Predicated region
      $region49: #{_actor_forward_impl.1} parent=47 // pred_check
        %p1006 = pneg %p150
      $region50: #{_actor_forward_impl.1} parent=47 // pred_check_branch
        %1008 = sbr.rel (%p1006) target = $region52
      $region51: #{_actor_forward_impl.1} parent=47 // pred_region
        %s1009 = smul.u32 16, %s17
        %p1010 = scmp.lt.s32.totalorder %s1009, 31
        %s1011 = scalar_select %p1010, %s1009, 31
        %s1012 = smul.addr %s1011, 4
        %s1013 = scalar_lea.vmem %s5, %s1012
      $region52: #{_actor_forward_impl.1} parent=47 // pred_fallthru
        _
    $region48: #{_actor_forward_impl.1} parent=5 // pred_fallthru
      _
  $region6: #{_actor_forward_impl.1} parent=0 // loop_footer
    %s15 = sadd.s32 1, %s11
  $region7: #{_actor_forward_impl.1} parent=0 // loop_footer_branch
    %10 = sbr.rel target = $region3
  $region8: #{_actor_forward_impl.1} parent=0 // loop_exit
    _

</llo_original>
